<compile_context>
chip_gen: v7x
topology: tpu7x:2x2x1
jax: 0.10.0
libtpu: 0.0.40
codegen_flags: <defaults>
</compile_context>

<pallas_src>
import functools

import jax
import jax.numpy as jnp
from jax import lax
from jax.experimental import pallas as pl
from jax.experimental.pallas import tpu as pltpu


def _round_up(x, m):
    return (x + m - 1) // m * m


# ---------------------------------------------------------------------------
# Pass 1: conv tile (bf16 operands on the MXU, f32 accumulate) + per-tile
#         per-channel partial BatchNorm statistics (sum, sum of squares).
# ---------------------------------------------------------------------------
def conv_stats_kernel(p_ref, w_ref, y_ref, stats_ref):
    # (tm, K) @ (K, Cp) -> (tm, Cp) f32 on the MXU.
    y = jnp.dot(p_ref[...], w_ref[...], preferred_element_type=jnp.float32)
    y_ref[...] = y

    cp = y.shape[1]
    s = jnp.sum(y, axis=0, keepdims=True)          # (1, Cp) partial sum
    ss = jnp.sum(y * y, axis=0, keepdims=True)     # (1, Cp) partial sum of squares
    rows = lax.broadcasted_iota(jnp.int32, (8, cp), 0)
    stats = jnp.where(rows == 0, s, 0.0) + jnp.where(rows == 1, ss, 0.0)
    stats_ref[0] = stats                           # rows 0/1 carry sum / sumsq


# ---------------------------------------------------------------------------
# Pass 2: y * scale + shift, then ReLU (scale/shift fold mean/var/gamma/beta).
# ---------------------------------------------------------------------------
def bn_relu_kernel(y_ref, scale_ref, shift_ref, o_ref):
    o_ref[...] = jnp.maximum(y_ref[...] * scale_ref[...] + shift_ref[...], 0.0)


def vgg_conv_forward(x_nchw, weight, bias, gamma, beta, *, block_m=512):
    """x_nchw: (N, Cin, H, W); weight: (Cout, Cin, 3, 3). Returns NCHW float32."""
    # Training-mode BatchNorm subtracts the batch mean, so the per-channel conv bias
    # cancels exactly -> drop it (saves one VPU pass over M*Cout and one input DMA).
    del bias

    N, Cin, H, W = x_nchw.shape
    Cout, _, KH, KW = weight.shape
    assert KH == 3 and KW == 3, "this wrapper implements kernel_size=3, padding=1"

    M = N * H * W
    K = Cin * KH * KW
    Cp = _round_up(Cout, 128)                # lane-dense output channels
    tm = _round_up(min(block_m, M), 16)      # bf16 sublane-friendly row tile
    Mp = _round_up(M, tm)
    n_tiles = Mp // tm

    # --- glue: NCHW -> NHWC (bf16), pad, im2col ordered to match
    #     weight.reshape(Cout, Cin*KH*KW) ---
    x = jnp.transpose(x_nchw, (0, 2, 3, 1)).astype(jnp.bfloat16)     # (N, H, W, Cin)
    xp = jnp.pad(x, ((0, 0), (1, 1), (1, 1), (0, 0)))
    shards = [xp[:, dh:dh + H, dw:dw + W, :] for dh in range(KH) for dw in range(KW)]
    patches = jnp.stack(shards, axis=-1).reshape(M, K)               # (M, Cin*9)
    if Mp != M:
        patches = jnp.pad(patches, ((0, Mp - M), (0, 0)))            # zero rows: no stat impact

    w2d = weight.reshape(Cout, K).T.astype(jnp.bfloat16)             # (K, Cout)
    if Cp != Cout:
        w2d = jnp.pad(w2d, ((0, 0), (0, Cp - Cout)))

    bytes_p1 = Mp * K * 2 + K * Cp * 2 + Mp * Cp * 4 + n_tiles * 8 * Cp * 4
    y2d, part_stats = pl.pallas_call(
        conv_stats_kernel,
        out_shape=(jax.ShapeDtypeStruct((Mp, Cp), jnp.float32),
                   jax.ShapeDtypeStruct((n_tiles, 8, Cp), jnp.float32)),
        grid_spec=pltpu.PrefetchScalarGridSpec(
            num_scalar_prefetch=0,
            grid=(n_tiles,),
            in_specs=[
                pl.BlockSpec((tm, K), lambda i: (i, 0)),        # patches tile (pipelined)
                pl.BlockSpec((K, Cp), lambda i: (0, 0)),        # weights (resident, DMA once)
            ],
            out_specs=[
                pl.BlockSpec((tm, Cp), lambda i: (i, 0)),       # conv output tile
                pl.BlockSpec((1, 8, Cp), lambda i: (i, 0, 0)),  # per-tile partial stats
            ],
        ),
        compiler_params=pltpu.CompilerParams(
            dimension_semantics=("parallel",),
            vmem_limit_bytes=48 * 1024 * 1024),
        cost_estimate=pl.CostEstimate(
            flops=2 * Mp * K * Cp, transcendentals=0, bytes_accessed=bytes_p1),
    )(patches, w2d)

    # --- tiny global reduction -> fold BN (batch stats) into per-channel scale/shift ---
    stats = jnp.sum(part_stats, axis=0)                              # (8, Cp)
    mean = stats[0] / M
    var = jnp.maximum(stats[1] / M - mean * mean, 0.0)               # biased variance
    inv_std = lax.rsqrt(var + 1e-5)
    g = jnp.pad(gamma.astype(jnp.float32), (0, Cp - Cout))
    b = jnp.pad(beta.astype(jnp.float32), (0, Cp - Cout))
    scale = (g * inv_std).reshape(1, Cp)
    shift = (b - g * inv_std * mean).reshape(1, Cp)

    bytes_p2 = 2 * Mp * Cp * 4 + 2 * Cp * 4
    out2d = pl.pallas_call(
        bn_relu_kernel,
        out_shape=jax.ShapeDtypeStruct((Mp, Cp), jnp.float32),
        grid_spec=pltpu.PrefetchScalarGridSpec(
            num_scalar_prefetch=0,
            grid=(n_tiles,),
            in_specs=[
                pl.BlockSpec((tm, Cp), lambda i: (i, 0)),
                pl.BlockSpec((1, Cp), lambda i: (0, 0)),
                pl.BlockSpec((1, Cp), lambda i: (0, 0)),
            ],
            out_specs=pl.BlockSpec((tm, Cp), lambda i: (i, 0)),
        ),
        compiler_params=pltpu.CompilerParams(
            dimension_semantics=("parallel",),
            vmem_limit_bytes=48 * 1024 * 1024),
        cost_estimate=pl.CostEstimate(
            flops=2 * Mp * Cp, transcendentals=0, bytes_accessed=bytes_p2),
    )(y2d, scale, shift)

    # Module API is NCHW; if the downstream consumer takes NHWC, return `out` directly
    # and skip the transpose (saves a full-tensor HBM round trip).
    out = out2d[:M, :Cout].reshape(N, H, W, Cout)
    return jnp.transpose(out, (0, 3, 1, 2))


def vgg_conv_reference(x_nchw, weight, bias, gamma, beta, conv_in_dtype=jnp.float32):
    """Pure-JAX reference (conv + batch-stat BN + ReLU) for verification."""
    y = lax.conv_general_dilated(
        x_nchw.astype(conv_in_dtype), weight.astype(conv_in_dtype),
        window_strides=(1, 1), padding=((1, 1), (1, 1)),
        dimension_numbers=("NCHW", "OIHW", "NCHW"),
        preferred_element_type=jnp.float32)
    y = y + bias.reshape(1, -1, 1, 1).astype(jnp.float32)
    mean = jnp.mean(y, axis=(0, 2, 3), keepdims=True)
    var = jnp.mean((y - mean) ** 2, axis=(0, 2, 3), keepdims=True)
    y_hat = (y - mean) * lax.rsqrt(var + 1e-5)
    y_hat = y_hat * gamma.reshape(1, -1, 1, 1) + beta.reshape(1, -1, 1, 1)
    return jnp.maximum(y_hat, 0.0)


if __name__ == "__main__":
    N, Cin, Cout, H, W, K = 2, 4, 8, 16, 16, 3

    key = jax.random.PRNGKey(0)
    kx, kw, kb, kg, kbt = jax.random.split(key, 5)

    x = jax.random.normal(kx, (N, Cin, H, W), dtype=jnp.float32)
    fan_in = Cin * K * K
    weight = jax.random.normal(kw, (Cout, Cin, K, K), dtype=jnp.float32) * (1.0 / fan_in) ** 0.5
    bias = jax.random.normal(kb, (Cout,), dtype=jnp.float32) * 0.1
    gamma = 1.0 + 0.1 * jax.random.normal(kg, (Cout,), dtype=jnp.float32)
    beta = 0.1 * jax.random.normal(kbt, (Cout,), dtype=jnp.float32)

    # block_m=96 on purpose at this toy shape: forces multiple grid tiles (exercising
    # the global BN reduction across tiles) plus a zero-padded tail tile.
    fwd = jax.jit(functools.partial(vgg_conv_forward, block_m=96))
    out = jax.block_until_ready(fwd(x, weight, bias, gamma, beta))
    assert out.shape == (N, Cout, H, W), out.shape

    # Precision-matched reference (bf16 conv operands, f32 accumulation).
    ref = jax.block_until_ready(
        vgg_conv_reference(x, weight, bias, gamma, beta, conv_in_dtype=jnp.bfloat16))
    assert jnp.allclose(out, ref, atol=2e-3, rtol=2e-3), float(jnp.max(jnp.abs(out - ref)))

    # Sanity check against full-f32 module semantics (difference = bf16 MXU rounding only).
    ref32 = jax.block_until_ready(vgg_conv_reference(x, weight, bias, gamma, beta))
    assert jnp.allclose(out, ref32, atol=5e-2, rtol=5e-2), float(jnp.max(jnp.abs(out - ref32)))

    print("KERNEL_OK")
</pallas_src>

<mosaic_0001>
module attributes {stable_mosaic.version = 11 : i64} {
  func.func @conv_stats_kernel(%arg0: i32, %arg1: memref<96x36xbf16, #tpu.memory_space<vmem>>, %arg2: memref<36x128xbf16, #tpu.memory_space<vmem>>, %arg3: memref<96x128xf32, #tpu.memory_space<vmem>>, %arg4: memref<1x8x128xf32, #tpu.memory_space<vmem>>) attributes {dimension_semantics = [#tpu.dimension_semantics<parallel>], iteration_bounds = array<i64: 6>, scalar_prefetch = 0 : i64, scratch_operands = 0 : i64, tpu.core_type = #tpu.core_type<tc>, window_params = [{transform_indices = @transform_0, window_bounds = array<i64: 96, 36>}, {pipeline_mode = #tpu.pipeline_mode<synchronous>, transform_indices = @transform_1, window_bounds = array<i64: 36, 128>}, {transform_indices = @transform_2, window_bounds = array<i64: 96, 128>}, {transform_indices = @transform_3, window_bounds = array<i64: 1, 8, 128>}]} {
    %c0 = arith.constant 0 : index
    %c0_0 = arith.constant 0 : index
    %0 = vector.load %arg1[%c0, %c0_0] : memref<96x36xbf16, #tpu.memory_space<vmem>>, vector<96x36xbf16>
    %c0_1 = arith.constant 0 : index
    %c0_2 = arith.constant 0 : index
    %1 = vector.load %arg2[%c0_1, %c0_2] : memref<36x128xbf16, #tpu.memory_space<vmem>>, vector<36x128xbf16>
    %cst = arith.constant dense<0.000000e+00> : vector<96x128xf32>
    %2 = tpu.matmul %0, %1, %cst {dimension_numbers = #tpu.dot_dimension_numbers<[1], [0], [0], [1], [0, 0, 1, 1], [], []>} : vector<96x36xbf16>, vector<36x128xbf16>, vector<96x128xf32> -> vector<96x128xf32>
    %c0_3 = arith.constant 0 : index
    %c0_4 = arith.constant 0 : index
    %3 = vector.load %arg3[%c0_3, %c0_4] : memref<96x128xf32, #tpu.memory_space<vmem>>, vector<96x128xf32>
    tpu.vector_store %arg3[%c0_3, %c0_4], %2 {strides = array<i32>} : memref<96x128xf32, #tpu.memory_space<vmem>>, vector<96x128xf32>,
    %cst_5 = arith.constant dense<0.000000e+00> : vector<128xf32>
    %4 = vector.multi_reduction <add>, %2, %cst_5 [0] : vector<96x128xf32> to vector<128xf32>
    %5 = vector.shape_cast %4 : vector<128xf32> to vector<1x128xf32>
    %6 = arith.mulf %2, %2 : vector<96x128xf32>
    %cst_6 = arith.constant dense<0.000000e+00> : vector<128xf32>
    %7 = vector.multi_reduction <add>, %6, %cst_6 [0] : vector<96x128xf32> to vector<128xf32>
    %8 = vector.shape_cast %7 : vector<128xf32> to vector<1x128xf32>
    %9 = tpu.iota {dimensions = array<i32: 0>} : vector<8x128xi32>
    %c0_i32 = arith.constant 0 : i32
    %10 = vector.broadcast %c0_i32 : i32 to vector<8x128xi32>
    %11 = arith.cmpi eq, %9, %10 : vector<8x128xi32>
    %cst_7 = arith.constant 0.000000e+00 : f32
    %12 = vector.shape_cast %5 : vector<1x128xf32> to vector<1x128xf32>
    %13 = vector.broadcast %12 : vector<1x128xf32> to vector<8x128xf32>
    %14 = vector.broadcast %cst_7 : f32 to vector<8x128xf32>
    %15 = arith.select %11, %13, %14 : vector<8x128xi1>, vector<8x128xf32>
    %c1_i32 = arith.constant 1 : i32
    %16 = vector.broadcast %c1_i32 : i32 to vector<8x128xi32>
    %17 = arith.cmpi eq, %9, %16 : vector<8x128xi32>
    %cst_8 = arith.constant 0.000000e+00 : f32
    %18 = vector.shape_cast %8 : vector<1x128xf32> to vector<1x128xf32>
    %19 = vector.broadcast %18 : vector<1x128xf32> to vector<8x128xf32>
    %20 = vector.broadcast %cst_8 : f32 to vector<8x128xf32>
    %21 = arith.select %17, %19, %20 : vector<8x128xi1>, vector<8x128xf32>
    %22 = arith.addf %15, %21 : vector<8x128xf32>
    %c0_9 = arith.constant 0 : index
    %c0_10 = arith.constant 0 : index
    %c0_11 = arith.constant 0 : index
    %23 = vector.load %arg4[%c0_9, %c0_10, %c0_11] : memref<1x8x128xf32, #tpu.memory_space<vmem>>, vector<1x8x128xf32>
    %24 = vector.shape_cast %23 : vector<1x8x128xf32> to vector<8x128xf32>
    %25 = vector.shape_cast %22 : vector<8x128xf32> to vector<1x8x128xf32>
    tpu.vector_store %arg4[%c0_9, %c0_10, %c0_11], %25 {strides = array<i32>} : memref<1x8x128xf32, #tpu.memory_space<vmem>>, vector<1x8x128xf32>,
    return
  }
  func.func @transform_0(%arg0: i32) -> (i32, i32) {
    %c0_i32 = arith.constant 0 : i32
    %c0_i32_0 = arith.constant 0 : i32
    return %arg0, %c0_i32 : i32, i32
  }
  func.func @transform_1(%arg0: i32) -> (i32, i32) {
    %c0_i32 = arith.constant 0 : i32
    %c0_i32_0 = arith.constant 0 : i32
    %c0_i32_1 = arith.constant 0 : i32
    return %c0_i32, %c0_i32_0 : i32, i32
  }
  func.func @transform_2(%arg0: i32) -> (i32, i32) {
    %c0_i32 = arith.constant 0 : i32
    %c0_i32_0 = arith.constant 0 : i32
    return %arg0, %c0_i32 : i32, i32
  }
  func.func @transform_3(%arg0: i32) -> (i32, i32, i32) {
    %c0_i32 = arith.constant 0 : i32
    %c0_i32_0 = arith.constant 0 : i32
    %c0_i32_1 = arith.constant 0 : i32
    return %arg0, %c0_i32, %c0_i32_0 : i32, i32, i32
  }
}

module attributes {stable_mosaic.version = 11 : i64} {
  func.func @bn_relu_kernel(%arg0: i32, %arg1: memref<96x128xf32, #tpu.memory_space<vmem>>, %arg2: memref<1x128xf32, #tpu.memory_space<vmem>>, %arg3: memref<1x128xf32, #tpu.memory_space<vmem>>, %arg4: memref<96x128xf32, #tpu.memory_space<vmem>>) attributes {dimension_semantics = [#tpu.dimension_semantics<parallel>], iteration_bounds = array<i64: 6>, scalar_prefetch = 0 : i64, scratch_operands = 0 : i64, tpu.core_type = #tpu.core_type<tc>, window_params = [{transform_indices = @transform_0, window_bounds = array<i64: 96, 128>}, {pipeline_mode = #tpu.pipeline_mode<synchronous>, transform_indices = @transform_1, window_bounds = array<i64: 1, 128>}, {pipeline_mode = #tpu.pipeline_mode<synchronous>, transform_indices = @transform_2, window_bounds = array<i64: 1, 128>}, {transform_indices = @transform_3, window_bounds = array<i64: 96, 128>}]} {
    %c0 = arith.constant 0 : index
    %c0_0 = arith.constant 0 : index
    %0 = vector.load %arg1[%c0, %c0_0] : memref<96x128xf32, #tpu.memory_space<vmem>>, vector<96x128xf32>
    %c0_1 = arith.constant 0 : index
    %c0_2 = arith.constant 0 : index
    %1 = vector.load %arg2[%c0_1, %c0_2] : memref<1x128xf32, #tpu.memory_space<vmem>>, vector<1x128xf32>
    %2 = vector.broadcast %1 : vector<1x128xf32> to vector<96x128xf32>
    %3 = arith.mulf %0, %2 : vector<96x128xf32>
    %c0_3 = arith.constant 0 : index
    %c0_4 = arith.constant 0 : index
    %4 = vector.load %arg3[%c0_3, %c0_4] : memref<1x128xf32, #tpu.memory_space<vmem>>, vector<1x128xf32>
    %5 = vector.broadcast %4 : vector<1x128xf32> to vector<96x128xf32>
    %6 = arith.addf %3, %5 : vector<96x128xf32>
    %cst = arith.constant 0.000000e+00 : f32
    %7 = vector.broadcast %cst : f32 to vector<96x128xf32>
    %8 = arith.maximumf %6, %7 : vector<96x128xf32>
    %c0_5 = arith.constant 0 : index
    %c0_6 = arith.constant 0 : index
    %9 = vector.load %arg4[%c0_5, %c0_6] : memref<96x128xf32, #tpu.memory_space<vmem>>, vector<96x128xf32>
    tpu.vector_store %arg4[%c0_5, %c0_6], %8 {strides = array<i32>} : memref<96x128xf32, #tpu.memory_space<vmem>>, vector<96x128xf32>,
    return
  }
  func.func @transform_0(%arg0: i32) -> (i32, i32) {
    %c0_i32 = arith.constant 0 : i32
    %c0_i32_0 = arith.constant 0 : i32
    return %arg0, %c0_i32 : i32, i32
  }
  func.func @transform_1(%arg0: i32) -> (i32, i32) {
    %c0_i32 = arith.constant 0 : i32
    %c0_i32_0 = arith.constant 0 : i32
    %c0_i32_1 = arith.constant 0 : i32
    return %c0_i32, %c0_i32_0 : i32, i32
  }
  func.func @transform_2(%arg0: i32) -> (i32, i32) {
    %c0_i32 = arith.constant 0 : i32
    %c0_i32_0 = arith.constant 0 : i32
    %c0_i32_1 = arith.constant 0 : i32
    return %c0_i32, %c0_i32_0 : i32, i32
  }
  func.func @transform_3(%arg0: i32) -> (i32, i32) {
    %c0_i32 = arith.constant 0 : i32
    %c0_i32_0 = arith.constant 0 : i32
    return %arg0, %c0_i32 : i32, i32
  }
}

</mosaic_0001>

<llo_original>
// kernel: vgg_conv_forward.3
$region0: #{vgg_conv_forward.3}
  #allocation0 [shape = 'u32[]', space=smem, size = 0x4, offset = 0x4, fixed_abs, tag = 'smem constant byte address 0x4 - core index']
  #allocation1 [shape = 'u32[144,128]{1,0:T(1,128)}', space=vmem, size = 0x12000, scoped, tag = 'internal scratch']
  %s0 = inlined_call_operand.vmem [shape: f32[576,128], index: 0, kind: input, shape index: {}]
  %s1 = inlined_call_operand.vmem [shape: f32[1,128], index: 1, kind: input, shape index: {}]
  %s2 = inlined_call_operand.vmem [shape: f32[1,128], index: 2, kind: input, shape index: {}]
  %s3 = inlined_call_operand.vmem [shape: f32[576,128], index: 3, kind: output, shape index: {}]
  %s4 = sld [smem:[#allocation0]]
  $region45: #{vgg_conv_forward.3} parent=0
    _
  %s6 = ssub.s32 1, %s4
  %s7 = scalar_select 0, %s6, %s4
  loop: start=0, step=1, limit=8
  $region2: #{vgg_conv_forward.3} parent=0 // loop_pre_header
    _
  $region3: #{vgg_conv_forward.3} parent=0 // loop_header
    %s9 = sphi 0, %s13
    %p10 = scmp.ge.s32.totalorder %s9, 8
    %s19 = sphi 0, %s21
    %s22 = sphi 0, %s19
    %s23 = sphi 0, %s22
    %s39 = sphi 0, %s23
    %s43 = sphi 0, %s43
    %s45 = sphi 0, %s43
    %s46 = sphi 0, %s45
    %s60 = sphi 0, %s46
    %s64 = sphi 0, %s64
    %s66 = sphi 0, %s64
    %s67 = sphi 0, %s66
    %s81 = sphi 0, %s67
    %s87 = sphi 0, %s89
    %s90 = sphi 0, %s87
    %s91 = sphi 0, %s90
    %s107 = sphi 0, %s91
  $region4: #{vgg_conv_forward.3} parent=0 // loop_header_branch
    %12 = sbr.rel (%p10) target = $region8
  $region5: #{vgg_conv_forward.3} parent=0 // loop_body
    %s14 = ssub.s32 %s9, 1
    %s15 = ssub.s32 %s9, 2
    %s16 = sadd.s32 %s9, 1
    %s17 = ssub.s32 %s9, %s16
    %p18 = scmp.eq.s32.totalorder %s17, 0
    %s20 = sadd.s32 %s19, 1
    %s21 = scalar_select %p18, %s19, %s20
    %p24 = pneg %p18
    %p25 = scmp.eq.s32.totalorder %s9, 5
    %p26 = por %p24, %p25
    %p27 = scmp.ne.s32.totalorder %s19, %s22
    %p28 = scmp.eq.s32.totalorder %s9, 0
    %p29 = por %p27, %p28
    %p30 = scmp.ne.s32.totalorder %s19, %s22
    %p31 = scmp.eq.s32.totalorder %s14, 5
    %p32 = por %p30, %p31
    %p33 = scmp.ne.s32.totalorder %s22, %s23
    %p34 = scmp.eq.s32.totalorder %s14, 0
    %p35 = por %p33, %p34
    %p36 = scmp.ne.s32.totalorder %s22, %s23
    %p37 = scmp.eq.s32.totalorder %s15, 5
    %p38 = por %p36, %p37
    %p40 = scmp.ne.s32.totalorder %s23, %s39
    %p41 = scmp.eq.s32.totalorder %s15, 0
    %p42 = por %p40, %p41
    %s44 = sadd.s32 %s43, 1
    %p47 = scmp.eq.s32.totalorder %s9, 5
    %p48 = scmp.ne.s32.totalorder %s43, %s45
    %p49 = scmp.eq.s32.totalorder %s9, 0
    %p50 = por %p48, %p49
    %p51 = scmp.ne.s32.totalorder %s43, %s45
    %p52 = scmp.eq.s32.totalorder %s14, 5
    %p53 = por %p51, %p52
    %p54 = scmp.ne.s32.totalorder %s45, %s46
    %p55 = scmp.eq.s32.totalorder %s14, 0
    %p56 = por %p54, %p55
    %p57 = scmp.ne.s32.totalorder %s45, %s46
    %p58 = scmp.eq.s32.totalorder %s15, 5
    %p59 = por %p57, %p58
    %p61 = scmp.ne.s32.totalorder %s46, %s60
    %p62 = scmp.eq.s32.totalorder %s15, 0
    %p63 = por %p61, %p62
    %s65 = sadd.s32 %s64, 1
    %p68 = scmp.eq.s32.totalorder %s9, 5
    %p69 = scmp.ne.s32.totalorder %s64, %s66
    %p70 = scmp.eq.s32.totalorder %s9, 0
    %p71 = por %p69, %p70
    %p72 = scmp.ne.s32.totalorder %s64, %s66
    %p73 = scmp.eq.s32.totalorder %s14, 5
    %p74 = por %p72, %p73
    %p75 = scmp.ne.s32.totalorder %s66, %s67
    %p76 = scmp.eq.s32.totalorder %s14, 0
    %p77 = por %p75, %p76
    %p78 = scmp.ne.s32.totalorder %s66, %s67
    %p79 = scmp.eq.s32.totalorder %s15, 5
    %p80 = por %p78, %p79
    %p82 = scmp.ne.s32.totalorder %s67, %s81
    %p83 = scmp.eq.s32.totalorder %s15, 0
    %p84 = por %p82, %p83
    %s85 = ssub.s32 %s9, %s16
    %p86 = scmp.eq.s32.totalorder %s85, 0
    %s88 = sadd.s32 %s87, 1
    %s89 = scalar_select %p86, %s87, %s88
    %p92 = pneg %p86
    %p93 = scmp.eq.s32.totalorder %s9, 5
    %p94 = por %p92, %p93
    %p95 = scmp.ne.s32.totalorder %s87, %s90
    %p96 = scmp.eq.s32.totalorder %s9, 0
    %p97 = por %p95, %p96
    %p98 = scmp.ne.s32.totalorder %s87, %s90
    %p99 = scmp.eq.s32.totalorder %s14, 5
    %p100 = por %p98, %p99
    %p101 = scmp.ne.s32.totalorder %s90, %s91
    %p102 = scmp.eq.s32.totalorder %s14, 0
    %p103 = por %p101, %p102
    %p104 = scmp.ne.s32.totalorder %s90, %s91
    %p105 = scmp.eq.s32.totalorder %s15, 5
    %p106 = por %p104, %p105
    %p108 = scmp.ne.s32.totalorder %s91, %s107
    %p109 = scmp.eq.s32.totalorder %s15, 0
    %p110 = por %p108, %p109
    %p111 = scmp.le.s32.totalorder 1, %s9
    %p112 = scmp.lt.s32.totalorder %s9, 7
    %p113 = pnand %p111, %p112
    %p114 = pneg %p113
    // Predicated region
    $region9: #{vgg_conv_forward.3} parent=5 // pred_check
      _
    $region10: #{vgg_conv_forward.3} parent=5 // pred_check_branch
      %116 = sbr.rel (%p113) target = $region12
    $region11: #{vgg_conv_forward.3} parent=5 // pred_region
      %s117 = ssub.s32 %s9, 1
      // Predicated region
      $region13: #{vgg_conv_forward.3} parent=11 // pred_check
        %p118 = pneg %p56
      $region14: #{vgg_conv_forward.3} parent=11 // pred_check_branch
        %120 = sbr.rel (%p118) target = $region16
      $region15: #{vgg_conv_forward.3} parent=11 // pred_region
        _
      $region16: #{vgg_conv_forward.3} parent=11 // pred_fallthru
        _
      // Predicated region
      $region17: #{vgg_conv_forward.3} parent=11 // pred_check
        %p121 = pneg %p77
      $region18: #{vgg_conv_forward.3} parent=11 // pred_check_branch
        %123 = sbr.rel (%p121) target = $region20
      $region19: #{vgg_conv_forward.3} parent=11 // pred_region
        _
      $region20: #{vgg_conv_forward.3} parent=11 // pred_fallthru
        _
    $region12: #{vgg_conv_forward.3} parent=5 // pred_fallthru
      _
    %p124 = scmp.lt.s32.totalorder %s9, 6
    // Predicated region
    $region21: #{vgg_conv_forward.3} parent=5 // pred_check
      %p125 = pneg %p124
    $region22: #{vgg_conv_forward.3} parent=5 // pred_check_branch
      %127 = sbr.rel (%p125) target = $region24
    $region23: #{vgg_conv_forward.3} parent=5 // pred_region
      // Predicated region
      $region25: #{vgg_conv_forward.3} parent=23 // pred_check
        %p128 = pneg %p29
      $region26: #{vgg_conv_forward.3} parent=23 // pred_check_branch
        %130 = sbr.rel (%p128) target = $region28
      $region27: #{vgg_conv_forward.3} parent=23 // pred_region
        %s131 = smul.u32 12, %s9
        %p132 = scmp.lt.s32.totalorder %s131, 71
        %s133 = scalar_select %p132, %s131, 71
        %s134 = smul.addr %s133, 8
        %s135 = scalar_lea.vmem %s0, %s134
        %s136 = smul.u32 12, %s9
      $region28: #{vgg_conv_forward.3} parent=23 // pred_fallthru
        _
    $region24: #{vgg_conv_forward.3} parent=5 // pred_fallthru
      _
    %p137 = scmp.le.s32.totalorder 1, %s9
    %p138 = scmp.lt.s32.totalorder %s9, 7
    %p139 = pnand %p137, %p138
    %p140 = pneg %p139
    // Predicated region
    $region29: #{vgg_conv_forward.3} parent=5 // pred_check
      _
    $region30: #{vgg_conv_forward.3} parent=5 // pred_check_branch
      %142 = sbr.rel (%p139) target = $region32
    $region31: #{vgg_conv_forward.3} parent=5 // pred_region
      %s143 = ssub.s32 %s9, 1
      %s144 = smul.u32 12, %s14
      %p145 = scmp.lt.s32.totalorder %s144, 71
      %s146 = scalar_select %p145, %s144, 71
      %s147 = smul.addr %s146, 8
      %s148 = scalar_lea.vmem %s0, %s147
      %p149 = pneg %p35
      %p150 = pneg %p32
      %p151 = pneg %p56
      %p152 = pneg %p53
      %p153 = pneg %p77
      %p154 = pneg %p74
      %p155 = pneg %p103
      %p156 = pneg %p100
      %s157 = smul.u32 12, %s14
      %p158 = scmp.lt.s32.totalorder %s157, 71
      %s159 = scalar_select %p158, %s157, 71
      %s160 = smul.addr %s159, 8
      %s161 = scalar_lea.vmem %s3, %s160
      %s162 = smul.u32 12, %s14
      %p163 = scmp.lt.s32.totalorder %s162, 71
      %s164 = scalar_select %p163, %s162, 71
      %s165 = smul.addr %s164, 8
      %s166 = scalar_lea.vmem %s0, %s165
      %s167 = smul.u32 12, %s14
      %s168 = smul.u32 12, %s14
      %p169 = scmp.lt.s32.totalorder %s168, 71
      %s170 = scalar_select %p169, %s168, 71
      %s171 = smul.addr %s170, 8
      %s172 = scalar_lea.vmem %s3, %s171
      %s173 = smul.u32 12, %s14
      %v174 = vld [vmem:[%s166] sm:$0xff]
      %v175 = vld [vmem:[%s166 + $0x8] sm:$0xff]
      %v176 = vld [vmem:[%s166 + $0x10] sm:$0xff]
      %v177 = vld [vmem:[%s166 + $0x18] sm:$0xff]
      %v178 = vld [vmem:[%s166 + $0x20] sm:$0xff]
      %v179 = vld [vmem:[%s166 + $0x28] sm:$0xff]
      %v180 = vld [vmem:[%s166 + $0x30] sm:$0xff]
      %v181 = vld [vmem:[%s166 + $0x38] sm:$0xff]
      %v182 = vld [vmem:[%s166 + $0x40] sm:$0xff]
      %v183 = vld [vmem:[%s166 + $0x48] sm:$0xff]
      %v184 = vld [vmem:[%s166 + $0x50] sm:$0xff]
      %v185 = vld [vmem:[%s166 + $0x58] sm:$0xff]
      %v186 = vld [vmem:[%s1] sm:$0x1]
      %v188 = vlaneseq
      %v189 = vshrl.u32 %v188, 7
      %v190 = vsub.s32 0, %v189
      %v191 = vrot.slane %v186, %v190
      %v193 = vmul.f32 %v174, %v191
      %v194 = vmul.f32 %v175, %v191
      %v195 = vmul.f32 %v176, %v191
      %v196 = vmul.f32 %v177, %v191
      %v197 = vmul.f32 %v178, %v191
      %v198 = vmul.f32 %v179, %v191
      %v199 = vmul.f32 %v180, %v191
      %v200 = vmul.f32 %v181, %v191
      %v201 = vmul.f32 %v182, %v191
      %v202 = vmul.f32 %v183, %v191
      %v203 = vmul.f32 %v184, %v191
      %v204 = vmul.f32 %v185, %v191
      %v205 = vld [vmem:[%s2] sm:$0x1]
      %v207 = vlaneseq
      %v208 = vshrl.u32 %v207, 7
      %v209 = vsub.s32 0, %v208
      %v210 = vrot.slane %v205, %v209
      %v212 = vadd.f32 %v193, %v210
      %v213 = vadd.f32 %v194, %v210
      %v214 = vadd.f32 %v195, %v210
      %v215 = vadd.f32 %v196, %v210
      %v216 = vadd.f32 %v197, %v210
      %v217 = vadd.f32 %v198, %v210
      %v218 = vadd.f32 %v199, %v210
      %v219 = vadd.f32 %v200, %v210
      %v220 = vadd.f32 %v201, %v210
      %v221 = vadd.f32 %v202, %v210
      %v222 = vadd.f32 %v203, %v210
      %v223 = vadd.f32 %v204, %v210
      %v224 = vmax.f32 %v212, 0.0
      %v225 = vmax.f32 %v213, 0.0
      %v226 = vmax.f32 %v214, 0.0
      %v227 = vmax.f32 %v215, 0.0
      %v228 = vmax.f32 %v216, 0.0
      %v229 = vmax.f32 %v217, 0.0
      %v230 = vmax.f32 %v218, 0.0
      %v231 = vmax.f32 %v219, 0.0
      %v232 = vmax.f32 %v220, 0.0
      %v233 = vmax.f32 %v221, 0.0
      %v234 = vmax.f32 %v222, 0.0
      %v235 = vmax.f32 %v223, 0.0
      %236 = vst [vmem:[%s172] sm:$0xff] %v224
      %237 = vst [vmem:[%s172 + $0x8] sm:$0xff] %v225
      %238 = vst [vmem:[%s172 + $0x10] sm:$0xff] %v226
      %239 = vst [vmem:[%s172 + $0x18] sm:$0xff] %v227
      %240 = vst [vmem:[%s172 + $0x20] sm:$0xff] %v228
      %241 = vst [vmem:[%s172 + $0x28] sm:$0xff] %v229
      %242 = vst [vmem:[%s172 + $0x30] sm:$0xff] %v230
      %243 = vst [vmem:[%s172 + $0x38] sm:$0xff] %v231
      %244 = vst [vmem:[%s172 + $0x40] sm:$0xff] %v232
      %245 = vst [vmem:[%s172 + $0x48] sm:$0xff] %v233
      %246 = vst [vmem:[%s172 + $0x50] sm:$0xff] %v234
      %247 = vst [vmem:[%s172 + $0x58] sm:$0xff] %v235
      %s248 = smul.u32 12, %s14
      %p249 = scmp.lt.s32.totalorder %s248, 71
      %s250 = scalar_select %p249, %s248, 71
      %s251 = smul.addr %s250, 8
      %s252 = scalar_lea.vmem %s3, %s251
      // Predicated region
      $region33: #{vgg_conv_forward.3} parent=31 // pred_check
        %p253 = pneg %p100
      $region34: #{vgg_conv_forward.3} parent=31 // pred_check_branch
        %255 = sbr.rel (%p253) target = $region36
      $region35: #{vgg_conv_forward.3} parent=31 // pred_region
        %s256 = smul.u32 12, %s14
      $region36: #{vgg_conv_forward.3} parent=31 // pred_fallthru
        _
    $region32: #{vgg_conv_forward.3} parent=5 // pred_fallthru
      _
    %p257 = scmp.le.s32.totalorder 2, %s9
    // Predicated region
    $region37: #{vgg_conv_forward.3} parent=5 // pred_check
      %p258 = pneg %p257
    $region38: #{vgg_conv_forward.3} parent=5 // pred_check_branch
      %260 = sbr.rel (%p258) target = $region40
    $region39: #{vgg_conv_forward.3} parent=5 // pred_region
      %s261 = ssub.s32 %s9, 2
      // Predicated region
      $region41: #{vgg_conv_forward.3} parent=39 // pred_check
        %p262 = pneg %p106
      $region42: #{vgg_conv_forward.3} parent=39 // pred_check_branch
        %264 = sbr.rel (%p262) target = $region44
      $region43: #{vgg_conv_forward.3} parent=39 // pred_region
        %s265 = smul.u32 12, %s15
        %p266 = scmp.lt.s32.totalorder %s265, 71
        %s267 = scalar_select %p266, %s265, 71
        %s268 = smul.addr %s267, 8
        %s269 = scalar_lea.vmem %s3, %s268
      $region44: #{vgg_conv_forward.3} parent=39 // pred_fallthru
        _
    $region40: #{vgg_conv_forward.3} parent=5 // pred_fallthru
      _
  $region6: #{vgg_conv_forward.3} parent=0 // loop_footer
    %s13 = sadd.s32 1, %s9
  $region7: #{vgg_conv_forward.3} parent=0 // loop_footer_branch
    %8 = sbr.rel target = $region3
  $region8: #{vgg_conv_forward.3} parent=0 // loop_exit
    _

// kernel: vgg_conv_forward.2
$region0: #{vgg_conv_forward.2}
  #allocation0 [shape = 'u32[]', space=smem, size = 0x4, offset = 0x4, fixed_abs, tag = 'smem constant byte address 0x4 - core index']
  #allocation1 [shape = 'u32[144,128]{1,0:T(1,128)}', space=vmem, size = 0x12000, scoped, tag = 'internal scratch']
  %s0 = inlined_call_operand.vmem [shape: bf16[576,36], index: 0, kind: input, shape index: {}]
  %s1 = inlined_call_operand.vmem [shape: bf16[36,128], index: 1, kind: input, shape index: {}]
  %s2 = inlined_call_operand.vmem [shape: f32[576,128], index: 2, kind: output, shape index: {0}]
  %s3 = inlined_call_operand.vmem [shape: f32[6,8,128], index: 3, kind: output, shape index: {1}]
  %4 = xla_tuple %s2, %s3
  %s5 = sld [smem:[#allocation0]]
  $region49: #{vgg_conv_forward.2} parent=0
    _
  %s7 = ssub.s32 1, %s5
  %s8 = scalar_select 0, %s7, %s5
  loop: start=0, step=1, limit=8
  $region2: #{vgg_conv_forward.2} parent=0 // loop_pre_header
    _
  $region3: #{vgg_conv_forward.2} parent=0 // loop_header
    %s10 = sphi 0, %s14
    %p11 = scmp.ge.s32.totalorder %s10, 8
    %s20 = sphi 0, %s22
    %s23 = sphi 0, %s20
    %s24 = sphi 0, %s23
    %s40 = sphi 0, %s24
    %s44 = sphi 0, %s44
    %s46 = sphi 0, %s44
    %s47 = sphi 0, %s46
    %s61 = sphi 0, %s47
    %s67 = sphi 0, %s69
    %s70 = sphi 0, %s67
    %s71 = sphi 0, %s70
    %s87 = sphi 0, %s71
    %s93 = sphi 0, %s95
    %s96 = sphi 0, %s93
    %s97 = sphi 0, %s96
    %s113 = sphi 0, %s97
  $region4: #{vgg_conv_forward.2} parent=0 // loop_header_branch
    %13 = sbr.rel (%p11) target = $region8
  $region5: #{vgg_conv_forward.2} parent=0 // loop_body
    %s15 = ssub.s32 %s10, 1
    %s16 = ssub.s32 %s10, 2
    %s17 = sadd.s32 %s10, 1
    %s18 = ssub.s32 %s10, %s17
    %p19 = scmp.eq.s32.totalorder %s18, 0
    %s21 = sadd.s32 %s20, 1
    %s22 = scalar_select %p19, %s20, %s21
    %p25 = pneg %p19
    %p26 = scmp.eq.s32.totalorder %s10, 5
    %p27 = por %p25, %p26
    %p28 = scmp.ne.s32.totalorder %s20, %s23
    %p29 = scmp.eq.s32.totalorder %s10, 0
    %p30 = por %p28, %p29
    %p31 = scmp.ne.s32.totalorder %s20, %s23
    %p32 = scmp.eq.s32.totalorder %s15, 5
    %p33 = por %p31, %p32
    %p34 = scmp.ne.s32.totalorder %s23, %s24
    %p35 = scmp.eq.s32.totalorder %s15, 0
    %p36 = por %p34, %p35
    %p37 = scmp.ne.s32.totalorder %s23, %s24
    %p38 = scmp.eq.s32.totalorder %s16, 5
    %p39 = por %p37, %p38
    %p41 = scmp.ne.s32.totalorder %s24, %s40
    %p42 = scmp.eq.s32.totalorder %s16, 0
    %p43 = por %p41, %p42
    %s45 = sadd.s32 %s44, 1
    %p48 = scmp.eq.s32.totalorder %s10, 5
    %p49 = scmp.ne.s32.totalorder %s44, %s46
    %p50 = scmp.eq.s32.totalorder %s10, 0
    %p51 = por %p49, %p50
    %p52 = scmp.ne.s32.totalorder %s44, %s46
    %p53 = scmp.eq.s32.totalorder %s15, 5
    %p54 = por %p52, %p53
    %p55 = scmp.ne.s32.totalorder %s46, %s47
    %p56 = scmp.eq.s32.totalorder %s15, 0
    %p57 = por %p55, %p56
    %p58 = scmp.ne.s32.totalorder %s46, %s47
    %p59 = scmp.eq.s32.totalorder %s16, 5
    %p60 = por %p58, %p59
    %p62 = scmp.ne.s32.totalorder %s47, %s61
    %p63 = scmp.eq.s32.totalorder %s16, 0
    %p64 = por %p62, %p63
    %s65 = ssub.s32 %s10, %s17
    %p66 = scmp.eq.s32.totalorder %s65, 0
    %s68 = sadd.s32 %s67, 1
    %s69 = scalar_select %p66, %s67, %s68
    %p72 = pneg %p66
    %p73 = scmp.eq.s32.totalorder %s10, 5
    %p74 = por %p72, %p73
    %p75 = scmp.ne.s32.totalorder %s67, %s70
    %p76 = scmp.eq.s32.totalorder %s10, 0
    %p77 = por %p75, %p76
    %p78 = scmp.ne.s32.totalorder %s67, %s70
    %p79 = scmp.eq.s32.totalorder %s15, 5
    %p80 = por %p78, %p79
    %p81 = scmp.ne.s32.totalorder %s70, %s71
    %p82 = scmp.eq.s32.totalorder %s15, 0
    %p83 = por %p81, %p82
    %p84 = scmp.ne.s32.totalorder %s70, %s71
    %p85 = scmp.eq.s32.totalorder %s16, 5
    %p86 = por %p84, %p85
    %p88 = scmp.ne.s32.totalorder %s71, %s87
    %p89 = scmp.eq.s32.totalorder %s16, 0
    %p90 = por %p88, %p89
    %s91 = ssub.s32 %s10, %s17
    %p92 = scmp.eq.s32.totalorder %s91, 0
    %s94 = sadd.s32 %s93, 1
    %s95 = scalar_select %p92, %s93, %s94
    %p98 = pneg %p92
    %p99 = scmp.eq.s32.totalorder %s10, 5
    %p100 = por %p98, %p99
    %p101 = scmp.ne.s32.totalorder %s93, %s96
    %p102 = scmp.eq.s32.totalorder %s10, 0
    %p103 = por %p101, %p102
    %p104 = scmp.ne.s32.totalorder %s93, %s96
    %p105 = scmp.eq.s32.totalorder %s15, 5
    %p106 = por %p104, %p105
    %p107 = scmp.ne.s32.totalorder %s96, %s97
    %p108 = scmp.eq.s32.totalorder %s15, 0
    %p109 = por %p107, %p108
    %p110 = scmp.ne.s32.totalorder %s96, %s97
    %p111 = scmp.eq.s32.totalorder %s16, 5
    %p112 = por %p110, %p111
    %p114 = scmp.ne.s32.totalorder %s97, %s113
    %p115 = scmp.eq.s32.totalorder %s16, 0
    %p116 = por %p114, %p115
    %p117 = scmp.le.s32.totalorder 1, %s10
    %p118 = scmp.lt.s32.totalorder %s10, 7
    %p119 = pnand %p117, %p118
    %p120 = pneg %p119
    // Predicated region
    $region9: #{vgg_conv_forward.2} parent=5 // pred_check
      _
    $region10: #{vgg_conv_forward.2} parent=5 // pred_check_branch
      %122 = sbr.rel (%p119) target = $region12
    $region11: #{vgg_conv_forward.2} parent=5 // pred_region
      %s123 = ssub.s32 %s10, 1
      // Predicated region
      $region13: #{vgg_conv_forward.2} parent=11 // pred_check
        %p124 = pneg %p57
      $region14: #{vgg_conv_forward.2} parent=11 // pred_check_branch
        %126 = sbr.rel (%p124) target = $region16
      $region15: #{vgg_conv_forward.2} parent=11 // pred_region
        _
      $region16: #{vgg_conv_forward.2} parent=11 // pred_fallthru
        _
    $region12: #{vgg_conv_forward.2} parent=5 // pred_fallthru
      _
    %p127 = scmp.lt.s32.totalorder %s10, 6
    // Predicated region
    $region17: #{vgg_conv_forward.2} parent=5 // pred_check
      %p128 = pneg %p127
    $region18: #{vgg_conv_forward.2} parent=5 // pred_check_branch
      %130 = sbr.rel (%p128) target = $region20
    $region19: #{vgg_conv_forward.2} parent=5 // pred_region
      // Predicated region
      $region21: #{vgg_conv_forward.2} parent=19 // pred_check
        %p131 = pneg %p30
      $region22: #{vgg_conv_forward.2} parent=19 // pred_check_branch
        %133 = sbr.rel (%p131) target = $region24
      $region23: #{vgg_conv_forward.2} parent=19 // pred_region
        %s134 = smul.u32 12, %s10
        %p135 = scmp.lt.s32.totalorder %s134, 71
        %s136 = scalar_select %p135, %s134, 71
        %s137 = smul.addr %s136, 4
        %s138 = scalar_lea.vmem %s0, %s137
        %s139 = smul.u32 12, %s10
      $region24: #{vgg_conv_forward.2} parent=19 // pred_fallthru
        _
    $region20: #{vgg_conv_forward.2} parent=5 // pred_fallthru
      _
    %p140 = scmp.le.s32.totalorder 1, %s10
    %p141 = scmp.lt.s32.totalorder %s10, 7
    %p142 = pnand %p140, %p141
    %p143 = pneg %p142
    // Predicated region
    $region25: #{vgg_conv_forward.2} parent=5 // pred_check
      _
    $region26: #{vgg_conv_forward.2} parent=5 // pred_check_branch
      %145 = sbr.rel (%p142) target = $region28
    $region27: #{vgg_conv_forward.2} parent=5 // pred_region
      %s146 = ssub.s32 %s10, 1
      %s147 = smul.u32 12, %s15
      %p148 = scmp.lt.s32.totalorder %s147, 71
      %s149 = scalar_select %p148, %s147, 71
      %s150 = smul.addr %s149, 4
      %s151 = scalar_lea.vmem %s0, %s150
      %p152 = pneg %p36
      %p153 = pneg %p33
      %p154 = pneg %p57
      %p155 = pneg %p54
      %p156 = pneg %p83
      %p157 = pneg %p80
      %s158 = smul.u32 12, %s15
      %p159 = scmp.lt.s32.totalorder %s158, 71
      %s160 = scalar_select %p159, %s158, 71
      %s161 = smul.addr %s160, 8
      %s162 = scalar_lea.vmem %s2, %s161
      %p163 = pneg %p109
      %p164 = pneg %p106
      %p165 = scmp.lt.s32.totalorder %s15, 5
      %s166 = scalar_select %p165, %s15, 5
      %s167 = smul.addr %s166, 8
      %s168 = scalar_lea.vmem %s3, %s167
      %s169 = smul.u32 12, %s15
      %p170 = scmp.lt.s32.totalorder %s169, 71
      %s171 = scalar_select %p170, %s169, 71
      %s172 = smul.addr %s171, 4
      %s173 = scalar_lea.vmem %s0, %s172
      %s174 = smul.u32 12, %s15
      %s175 = smul.u32 12, %s15
      %p176 = scmp.lt.s32.totalorder %s175, 71
      %s177 = scalar_select %p176, %s175, 71
      %s178 = smul.addr %s177, 8
      %s179 = scalar_lea.vmem %s2, %s178
      %s180 = smul.u32 12, %s15
      %p181 = scmp.lt.s32.totalorder %s15, 5
      %s182 = scalar_select %p181, %s15, 5
      %s183 = smul.addr %s182, 8
      %s184 = scalar_lea.vmem %s3, %s183
      %v186 = vld [vmem:[%s173] sm:$0xf]
      %v187 = vld [vmem:[%s173 + $0x4] sm:$0xf]
      %v188 = vld [vmem:[%s173 + $0x8] sm:$0xf]
      %v189 = vld [vmem:[%s173 + $0xc] sm:$0xf]
      %v190 = vld [vmem:[%s173 + $0x10] sm:$0xf]
      %v191 = vld [vmem:[%s173 + $0x14] sm:$0xf]
      %v192 = vld [vmem:[%s173 + $0x18] sm:$0xf]
      %v193 = vld [vmem:[%s173 + $0x1c] sm:$0xf]
      %v194 = vld [vmem:[%s173 + $0x20] sm:$0xf]
      %v195 = vld [vmem:[%s173 + $0x24] sm:$0xf]
      %v196 = vld [vmem:[%s173 + $0x28] sm:$0xf]
      %v197 = vld [vmem:[%s173 + $0x2c] sm:$0xf]
      %v198 = vld [vmem:[%s1] sm:$0xf]
      %v199 = vld [vmem:[%s1 + $0x4] sm:$0xf]
      %v200 = vld [vmem:[%s1 + $0x8] sm:$0xf]
      %v201 = vld [vmem:[%s1 + $0xc] sm:$0xf]
      %v202 = vld [vmem:[%s1 + $0x10] sm:$0x3]
      %v215 = vunpack.c.l.b16 %v186
      %v216 = vunpack.c.l.b16 %v187
      %v217 = vunpack.c.l.b16 %v188
      %v218 = vunpack.c.l.b16 %v189
      %v219 = vunpack.c.l.b16 %v190
      %v220 = vunpack.c.l.b16 %v191
      %v221 = vunpack.c.l.b16 %v192
      %v222 = vunpack.c.l.b16 %v193
      %v223 = vunpack.c.l.b16 %v194
      %v224 = vunpack.c.l.b16 %v195
      %v225 = vunpack.c.l.b16 %v196
      %v226 = vunpack.c.l.b16 %v197
      %v227 = vpack.c.b16 %v216, %v215
      %v228 = vpack.c.b16 %v218, %v217
      %v229 = vpack.c.b16 %v220, %v219
      %v230 = vpack.c.b16 %v222, %v221
      %v231 = vpack.c.b16 %v224, %v223
      %v232 = vpack.c.b16 %v226, %v225
      %v238 = vunpack.c.l.b16 %v198
      %v239 = vunpack.c.l.b16 %v199
      %v240 = vunpack.c.l.b16 %v200
      %v241 = vunpack.c.l.b16 %v201
      %v242 = vunpack.c.l.b16 %v202
      %v243 = vpack.c.b16 %v239, %v238
      %v244 = vpack.c.b16 %v241, %v240
      %v245 = vpack.c.b16 %v242, %v242
      %vm248 = vcmask 293888
      %v250 = vsel %vm248, %v227, 0
      %v253 = vsel %vm248, %v228, 0
      %v256 = vsel %vm248, %v229, 0
      %v259 = vsel %vm248, %v230, 0
      %v262 = vsel %vm248, %v231, 0
      %v265 = vsel %vm248, %v232, 0
      %vm267 = vcmask 1041408
      %v269 = vsel %vm267, %v245, 0
      %271 = vmatprep.subr.bf16.mxu0 0
      %272 = vmatpush1.bf16.msra.mxu0 %v243
      %273 = vmatprep.subr.bf16.mxu0 0
      %274 = vmatpush1.bf16.msra.mxu0 %v244
      %275 = vmatprep.subr.bf16.mxu0 0
      %276 = vmatpush1.bf16.msra.mxu0 %v269
      %277 = vmatprep.subr.bf16.mxu0 0
      %278 = vmatpush1.bf16.msra.mxu0 0
      %279 = vmatprep.subr.bf16.mxu0 0
      %280 = vmatpush1.bf16.msra.mxu0 0
      %281 = vmatprep.subr.bf16.mxu0 0
      %282 = vmatpush1.bf16.msra.mxu0 0
      %283 = vmatprep.subr.bf16.mxu0 0
      %284 = vmatpush1.bf16.msra.mxu0 0
      %285 = vmatprep.subr.bf16.mxu0 0
      %286 = vmatpush1.bf16.msra.mxu0 0
      %287 = vmatprep.subr.bf16.mxu0 0
      %288 = vmatpush1.bf16.msra.mxu0 0
      %289 = vmatprep.subr.bf16.mxu0 0
      %290 = vmatpush1.bf16.msra.mxu0 0
      %291 = vmatprep.subr.bf16.mxu0 0
      %292 = vmatpush1.bf16.msra.mxu0 0
      %293 = vmatprep.subr.bf16.mxu0 0
      %294 = vmatpush1.bf16.msra.mxu0 0
      %295 = vmatprep.subr.bf16.mxu0 0
      %296 = vmatpush1.bf16.msra.mxu0 0
      %297 = vmatprep.subr.bf16.mxu0 0
      %298 = vmatpush1.bf16.msra.mxu0 0
      %299 = vmatprep.subr.bf16.mxu0 0
      %300 = vmatpush1.bf16.msra.mxu0 0
      %301 = vmatprep.subr.bf16.mxu0 0
      %302 = vmatpush1.bf16.msra.mxu0 0
      %303 = vmatprep.mubr.bf16.mxu0 0
      %304 = vmatmul.mubr.bf16.gmra.mrb[0].mxu0 %v250
      %v305 = vpop.f32.mrb[0].mxu0
      %v306 = vadd.f32 0.0, %v305
      %v307 = vpop.f32.mrb[0].mxu0
      %v308 = vpop.f32.mrb[0].mxu0
      %v309 = vadd.f32 0.0, %v308
      %v310 = vpop.f32.mrb[0].mxu0
      %311 = vmatprep.mubr.bf16.mxu0 0
      %312 = vmatmul.mubr.bf16.gmra.mrb[0].mxu0 %v253
      %v313 = vpop.f32.mrb[0].mxu0
      %v314 = vadd.f32 0.0, %v313
      %v315 = vpop.f32.mrb[0].mxu0
      %v316 = vpop.f32.mrb[0].mxu0
      %v317 = vadd.f32 0.0, %v316
      %v318 = vpop.f32.mrb[0].mxu0
      %319 = vmatprep.mubr.bf16.mxu0 0
      %320 = vmatmul.mubr.bf16.gmra.mrb[0].mxu0 %v256
      %v321 = vpop.f32.mrb[0].mxu0
      %v322 = vadd.f32 0.0, %v321
      %v323 = vpop.f32.mrb[0].mxu0
      %v324 = vpop.f32.mrb[0].mxu0
      %v325 = vadd.f32 0.0, %v324
      %v326 = vpop.f32.mrb[0].mxu0
      %327 = vmatprep.mubr.bf16.mxu0 0
      %328 = vmatmul.mubr.bf16.gmra.mrb[0].mxu0 %v259
      %v329 = vpop.f32.mrb[0].mxu0
      %v330 = vadd.f32 0.0, %v329
      %v331 = vpop.f32.mrb[0].mxu0
      %v332 = vpop.f32.mrb[0].mxu0
      %v333 = vadd.f32 0.0, %v332
      %v334 = vpop.f32.mrb[0].mxu0
      %335 = vmatprep.mubr.bf16.mxu0 0
      %336 = vmatmul.mubr.bf16.gmra.mrb[0].mxu0 %v262
      %v337 = vpop.f32.mrb[0].mxu0
      %v338 = vadd.f32 0.0, %v337
      %v339 = vpop.f32.mrb[0].mxu0
      %v340 = vpop.f32.mrb[0].mxu0
      %v341 = vadd.f32 0.0, %v340
      %v342 = vpop.f32.mrb[0].mxu0
      %343 = vmatprep.mubr.bf16.mxu0 0
      %344 = vmatmul.mubr.bf16.gmra.mrb[0].mxu0 %v265
      %v345 = vpop.f32.mrb[0].mxu0
      %v346 = vadd.f32 0.0, %v345
      %v347 = vpop.f32.mrb[0].mxu0
      %v348 = vpop.f32.mrb[0].mxu0
      %v349 = vadd.f32 0.0, %v348
      %v350 = vpop.f32.mrb[0].mxu0
      %351 = vdwg.mxu0
      %352 = vst [vmem:[%s179] sm:$0xff] %v306
      %353 = vst [vmem:[%s179 + $0x8] sm:$0xff] %v309
      %354 = vst [vmem:[%s179 + $0x10] sm:$0xff] %v314
      %355 = vst [vmem:[%s179 + $0x18] sm:$0xff] %v317
      %356 = vst [vmem:[%s179 + $0x20] sm:$0xff] %v322
      %357 = vst [vmem:[%s179 + $0x28] sm:$0xff] %v325
      %358 = vst [vmem:[%s179 + $0x30] sm:$0xff] %v330
      %359 = vst [vmem:[%s179 + $0x38] sm:$0xff] %v333
      %360 = vst [vmem:[%s179 + $0x40] sm:$0xff] %v338
      %361 = vst [vmem:[%s179 + $0x48] sm:$0xff] %v341
      %362 = vst [vmem:[%s179 + $0x50] sm:$0xff] %v346
      %363 = vst [vmem:[%s179 + $0x58] sm:$0xff] %v349
      %v364 = vadd.f32 %v306, %v309
      %v365 = vadd.f32 %v364, %v314
      %v366 = vadd.f32 %v365, %v317
      %v367 = vadd.f32 %v366, %v322
      %v368 = vadd.f32 %v367, %v325
      %v369 = vadd.f32 %v368, %v330
      %v370 = vadd.f32 %v369, %v333
      %v371 = vadd.f32 %v370, %v338
      %v372 = vadd.f32 %v371, %v341
      %v373 = vadd.f32 %v372, %v346
      %v374 = vadd.f32 %v373, %v349
      %v375 = vrot.slane %v374, 4
      %v376 = vadd.f32 %v374, %v375
      %v377 = vrot.slane %v376, 2
      %v378 = vadd.f32 %v376, %v377
      %v379 = vrot.slane %v378, 1
      %v380 = vadd.f32 %v378, %v379
      %v381 = vmul.f32 %v306, %v306
      %v382 = vmul.f32 %v309, %v309
      %v383 = vmul.f32 %v314, %v314
      %v384 = vmul.f32 %v317, %v317
      %v385 = vmul.f32 %v322, %v322
      %v386 = vmul.f32 %v325, %v325
      %v387 = vmul.f32 %v330, %v330
      %v388 = vmul.f32 %v333, %v333
      %v389 = vmul.f32 %v338, %v338
      %v390 = vmul.f32 %v341, %v341
      %v391 = vmul.f32 %v346, %v346
      %v392 = vmul.f32 %v349, %v349
      %v393 = vadd.f32 %v381, %v382
      %v394 = vadd.f32 %v393, %v383
      %v395 = vadd.f32 %v394, %v384
      %v396 = vadd.f32 %v395, %v385
      %v397 = vadd.f32 %v396, %v386
      %v398 = vadd.f32 %v397, %v387
      %v399 = vadd.f32 %v398, %v388
      %v400 = vadd.f32 %v399, %v389
      %v401 = vadd.f32 %v400, %v390
      %v402 = vadd.f32 %v401, %v391
      %v403 = vadd.f32 %v402, %v392
      %v404 = vrot.slane %v403, 4
      %v405 = vadd.f32 %v403, %v404
      %v406 = vrot.slane %v405, 2
      %v407 = vadd.f32 %v405, %v406
      %v408 = vrot.slane %v407, 1
      %v409 = vadd.f32 %v407, %v408
      %v410 = vlaneseq
      %v411 = vshrl.u32 %v410, 7
      %vm412 = vcmp.eq.s32.totalorder %v411, 0
      %v413 = vsel %vm412, %v380, 0.0
      %vm414 = vcmp.eq.s32.totalorder %v411, 1
      %v415 = vsel %vm414, %v409, 0.0
      %v416 = vadd.f32 %v413, %v415
      %417 = vst [vmem:[%s184] sm:$0xff] %v416
      %s418 = smul.u32 12, %s15
      %p419 = scmp.lt.s32.totalorder %s418, 71
      %s420 = scalar_select %p419, %s418, 71
      %s421 = smul.addr %s420, 8
      %s422 = scalar_lea.vmem %s2, %s421
      %p423 = scmp.lt.s32.totalorder %s15, 5
      %s424 = scalar_select %p423, %s15, 5
      %s425 = smul.addr %s424, 8
      %s426 = scalar_lea.vmem %s3, %s425
      // Predicated region
      $region29: #{vgg_conv_forward.2} parent=27 // pred_check
        %p427 = pneg %p80
      $region30: #{vgg_conv_forward.2} parent=27 // pred_check_branch
        %429 = sbr.rel (%p427) target = $region32
      $region31: #{vgg_conv_forward.2} parent=27 // pred_region
        %s430 = smul.u32 12, %s15
      $region32: #{vgg_conv_forward.2} parent=27 // pred_fallthru
        _
      // Predicated region
      $region33: #{vgg_conv_forward.2} parent=27 // pred_check
        %p431 = pneg %p106
      $region34: #{vgg_conv_forward.2} parent=27 // pred_check_branch
        %433 = sbr.rel (%p431) target = $region36
      $region35: #{vgg_conv_forward.2} parent=27 // pred_region
        _
      $region36: #{vgg_conv_forward.2} parent=27 // pred_fallthru
        _
    $region28: #{vgg_conv_forward.2} parent=5 // pred_fallthru
      _
    %p434 = scmp.le.s32.totalorder 2, %s10
    // Predicated region
    $region37: #{vgg_conv_forward.2} parent=5 // pred_check
      %p435 = pneg %p434
    $region38: #{vgg_conv_forward.2} parent=5 // pred_check_branch
      %437 = sbr.rel (%p435) target = $region40
    $region39: #{vgg_conv_forward.2} parent=5 // pred_region
      %s438 = ssub.s32 %s10, 2
      // Predicated region
      $region41: #{vgg_conv_forward.2} parent=39 // pred_check
        %p439 = pneg %p86
      $region42: #{vgg_conv_forward.2} parent=39 // pred_check_branch
        %441 = sbr.rel (%p439) target = $region44
      $region43: #{vgg_conv_forward.2} parent=39 // pred_region
        %s442 = smul.u32 12, %s16
        %p443 = scmp.lt.s32.totalorder %s442, 71
        %s444 = scalar_select %p443, %s442, 71
        %s445 = smul.addr %s444, 8
        %s446 = scalar_lea.vmem %s2, %s445
      $region44: #{vgg_conv_forward.2} parent=39 // pred_fallthru
        _
      // Predicated region
      $region45: #{vgg_conv_forward.2} parent=39 // pred_check
        %p447 = pneg %p112
      $region46: #{vgg_conv_forward.2} parent=39 // pred_check_branch
        %449 = sbr.rel (%p447) target = $region48
      $region47: #{vgg_conv_forward.2} parent=39 // pred_region
        %p450 = scmp.lt.s32.totalorder %s16, 5
        %s451 = scalar_select %p450, %s16, 5
        %s452 = smul.addr %s451, 8
        %s453 = scalar_lea.vmem %s3, %s452
      $region48: #{vgg_conv_forward.2} parent=39 // pred_fallthru
        _
    $region40: #{vgg_conv_forward.2} parent=5 // pred_fallthru
      _
  $region6: #{vgg_conv_forward.2} parent=0 // loop_footer
    %s14 = sadd.s32 1, %s10
  $region7: #{vgg_conv_forward.2} parent=0 // loop_footer_branch
    %9 = sbr.rel target = $region3
  $region8: #{vgg_conv_forward.2} parent=0 // loop_exit
    _

</llo_original>
